<compile_context>
chip_gen: v7x
topology: tpu7x:2x2x1
jax: 0.10.0
libtpu: 0.0.40
codegen_flags: <defaults>
</compile_context>

<pallas_src>
import functools

import jax
import jax.numpy as jnp
from jax.experimental import pallas as pl
from jax.experimental.pallas import tpu as pltpu


def _wmse_partial_kernel(x_ref, y_ref, out_ref, *, s_total, ts):
    """Grid step (i, j): batch block i, S block j.

    x_ref   : VMEM [tb, ts, D] input tile
    y_ref   : VMEM [tb, ts, D] target tile
    out_ref : VMEM f32[tb, 1, D] per-sample lane partial sums (resident across j)
    """
    j = pl.program_id(1)

    @pl.when(j == 0)
    def _():
        out_ref[...] = jnp.zeros_like(out_ref)

    diff = x_ref[...].astype(jnp.float32) - y_ref[...].astype(jnp.float32)
    sq = diff * diff

    if s_total % ts != 0:
        # Static: only the ragged-S configuration pays for this mask.  Without it
        # the OOB rows of the last S block would add garbage into valid samples.
        row = jax.lax.broadcasted_iota(jnp.int32, sq.shape, 1) + j * ts
        sq = jnp.where(row < s_total, sq, 0.0)

    # Reduce over the sublane (S) axis only; keep per-sample lane partials.
    # Cross-lane reduce, weighting and normalization happen once in the wrapper.
    out_ref[...] += jnp.sum(sq, axis=1, keepdims=True)


def _vmem_capacity_bytes():
    try:
        cap = int(pltpu.get_tpu_info().vmem_capacity_bytes)
        if cap > 0:
            return cap
    except Exception:
        pass
    return 64 << 20  # conservative fallback: assume the smallest (v7x-class) VMEM


def _budget(vmem_cap):
    """Return (target bytes per input tile per step, scoped VMEM limit cap)."""
    if vmem_cap <= (64 << 20):
        # v7x-class: 64 MiB VMEM, ~3.2 TB/s HBM -> big tiles to hide the ~0.35us
        # per-grid-step overhead, while staying well under physical VMEM.
        return 7 << 20, 56 << 20
    # v5e/v6e-class: 128 MiB VMEM.  8 MiB tiles are past the knee of the
    # step-overhead curve; allow a generous scoped limit (still << 128 MiB).
    return 8 << 20, 96 << 20


@functools.partial(jax.jit, static_argnames=("target_block_bytes",))
def weighted_mse(x, y, t, weights, *, target_block_bytes=None):
    """x, y: [B, S, D]; t: int32[B]; weights: f32[T]. Returns scalar f32 loss."""
    B, S, D = x.shape
    itemsize = max(jnp.dtype(x.dtype).itemsize, jnp.dtype(y.dtype).itemsize)

    vmem_cap = _vmem_capacity_bytes()
    auto_tpb, cap = _budget(vmem_cap)
    tpb = int(target_block_bytes) if target_block_bytes is not None else auto_tpb

    d_pad = -(-D // 128) * 128
    out_row_vmem = 8 * d_pad * 4          # one (1, D) f32 out row pads to (8, d_pad)
    bytes_per_sample = S * D * itemsize
    slack = 2 << 20

    if bytes_per_sample <= tpb or S <= 8:
        # Path A: whole samples per step, no S tiling.
        # TODO(synk): pathological S <= 8 with huge D*itemsize would need lane-axis
        # tiling; not handled (tile may exceed the scoped limit in that case).
        ts = S
        per_tb = 2 * 2 * bytes_per_sample + 2 * out_row_vmem
        tb = max(1, min(B,
                        max(1, tpb // max(1, bytes_per_sample)),
                        max(1, (cap - slack) // per_tb),
                        -(-B // 2)))       # keep >= 2 batch blocks (v7x: 2 TCs stream)
    else:
        # Path B: one sample per batch step, tile S in multiples of 8 sublanes.
        tb = 1
        ts = min(S, max(8, (tpb // (D * itemsize)) // 8 * 8))

    nb = -(-B // tb)
    ns = -(-S // ts)

    need = 2 * 2 * tb * ts * D * itemsize + 2 * tb * out_row_vmem + slack
    vmem_limit = int(min(max(need, 32 << 20), cap))

    kernel = functools.partial(_wmse_partial_kernel, s_total=S, ts=ts)

    partials = pl.pallas_call(
        kernel,
        out_shape=jax.ShapeDtypeStruct((B, 1, D), jnp.float32),
        grid_spec=pltpu.PrefetchScalarGridSpec(
            num_scalar_prefetch=0,
            grid=(nb, ns),
            in_specs=[
                pl.BlockSpec((tb, ts, D), lambda i, j: (i, j, 0)),   # input block
                pl.BlockSpec((tb, ts, D), lambda i, j: (i, j, 0)),   # target block
            ],
            # Resident across the S ("arbitrary") axis; one row of lane partials
            # per sample. Ragged-tail OOB rows are dropped on writeback.
            out_specs=pl.BlockSpec((tb, 1, D), lambda i, j: (i, 0, 0)),
        ),
        compiler_params=pltpu.CompilerParams(
            dimension_semantics=("parallel", "arbitrary"),
            vmem_limit_bytes=vmem_limit,
        ),
    )(x, y)

    # Finalize in the wrapper: gather per-timestep weights, cross-lane reduce,
    # weighted batch contraction, and a single 1/(B*S*D) normalization.
    wt = weights[t].astype(jnp.float32)            # (B,)
    per_sample = jnp.sum(partials, axis=(1, 2))    # (B,) = sum_{S,D} (x - y)^2
    return jnp.dot(per_sample, wt) / (B * S * D)


if __name__ == "__main__":
    key = jax.random.PRNGKey(0)
    k1, k2, k3, k4, k5, k6, k7, k8, k9 = jax.random.split(key, 9)

    # "Module init": betta schedule -> weights = 1 / betta (deterministic)
    T = 50
    betta = jnp.linspace(1e-4, 2e-2, T, dtype=jnp.float32)
    weights = 1.0 / betta

    def ref_loss(x, y, t):
        return jnp.mean(weights[t] * jnp.mean((x - y) ** 2, axis=(1, 2)))

    # Case 1: default auto-tiling (path A, tb = ceil(B/2) = 2, nb = 2).
    B, S, D = 4, 8, 128
    x = jax.random.normal(k1, (B, S, D), dtype=jnp.float32)
    y = jax.random.normal(k2, (B, S, D), dtype=jnp.float32)
    t = jax.random.randint(k3, (B,), 0, T, dtype=jnp.int32)
    loss = jax.block_until_ready(weighted_mse(x, y, t, weights))
    assert jnp.allclose(loss, ref_loss(x, y, t), rtol=1e-5, atol=1e-5), (
        loss, ref_loss(x, y, t))

    # Case 2: ragged batch (B % tb != 0), no padding copies anywhere.
    # Forced tb = 2 -> nb = 3 with a half-empty last block.
    B2 = 5
    x2 = jax.random.normal(k4, (B2, S, D), dtype=jnp.float32)
    y2 = jax.random.normal(k5, (B2, S, D), dtype=jnp.float32)
    t2 = jax.random.randint(k6, (B2,), 0, T, dtype=jnp.int32)
    loss2 = jax.block_until_ready(
        weighted_mse(x2, y2, t2, weights, target_block_bytes=2 * S * D * 4))
    assert jnp.allclose(loss2, ref_loss(x2, y2, t2), rtol=1e-5, atol=1e-5), (
        loss2, ref_loss(x2, y2, t2))

    # Case 3: S-tiling path with a ragged S tail (S=20, ts=8, masked last block).
    B3, S3 = 3, 20
    x3 = jax.random.normal(k7, (B3, S3, D), dtype=jnp.float32)
    y3 = jax.random.normal(k8, (B3, S3, D), dtype=jnp.float32)
    t3 = jax.random.randint(k9, (B3,), 0, T, dtype=jnp.int32)
    loss3 = jax.block_until_ready(
        weighted_mse(x3, y3, t3, weights, target_block_bytes=4096))
    ref3 = jnp.mean(weights[t3] * jnp.mean((x3 - y3) ** 2, axis=(1, 2)))
    assert jnp.allclose(loss3, ref3, rtol=1e-5, atol=1e-5), (loss3, ref3)

    print("KERNEL_OK")
</pallas_src>

<mosaic_0001>
module attributes {stable_mosaic.version = 11 : i64} {
  func.func @_wmse_partial_kernel(%arg0: i32, %arg1: i32, %arg2: memref<2x8x128xf32, #tpu.memory_space<vmem>>, %arg3: memref<2x8x128xf32, #tpu.memory_space<vmem>>, %arg4: memref<2x1x128xf32, #tpu.memory_space<vmem>>) attributes {dimension_semantics = [#tpu.dimension_semantics<parallel>, #tpu.dimension_semantics<arbitrary>], iteration_bounds = array<i64: 2, 1>, scalar_prefetch = 0 : i64, scratch_operands = 0 : i64, tpu.core_type = #tpu.core_type<tc>, window_params = [{transform_indices = @transform_0, window_bounds = array<i64: 2, 8, 128>}, {transform_indices = @transform_1, window_bounds = array<i64: 2, 8, 128>}, {transform_indices = @transform_2, window_bounds = array<i64: 2, 1, 128>}]} {
    %c0_i32 = arith.constant 0 : i32
    %0 = arith.cmpi eq, %arg1, %c0_i32 : i32
    %1 = arith.extui %0 : i1 to i32
    %c0_i32_0 = arith.constant 0 : i32
    %2 = arith.cmpi ne, %1, %c0_i32_0 : i32
    scf.if %2 {
      %cst_12 = arith.constant 0.000000e+00 : f32
      %12 = vector.broadcast %cst_12 : f32 to vector<2x1x128xf32>
      %c0_13 = arith.constant 0 : index
      %c0_14 = arith.constant 0 : index
      %c0_15 = arith.constant 0 : index
      %13 = vector.load %arg4[%c0_13, %c0_14, %c0_15] : memref<2x1x128xf32, #tpu.memory_space<vmem>>, vector<2x1x128xf32>
      tpu.vector_store %arg4[%c0_13, %c0_14, %c0_15], %12 {strides = array<i32>} : memref<2x1x128xf32, #tpu.memory_space<vmem>>, vector<2x1x128xf32>,
    } else {
    }
    %c0 = arith.constant 0 : index
    %c0_1 = arith.constant 0 : index
    %c0_2 = arith.constant 0 : index
    %3 = vector.load %arg2[%c0, %c0_1, %c0_2] : memref<2x8x128xf32, #tpu.memory_space<vmem>>, vector<2x8x128xf32>
    %c0_3 = arith.constant 0 : index
    %c0_4 = arith.constant 0 : index
    %c0_5 = arith.constant 0 : index
    %4 = vector.load %arg3[%c0_3, %c0_4, %c0_5] : memref<2x8x128xf32, #tpu.memory_space<vmem>>, vector<2x8x128xf32>
    %5 = arith.subf %3, %4 : vector<2x8x128xf32>
    %6 = arith.mulf %5, %5 : vector<2x8x128xf32>
    %c0_6 = arith.constant 0 : index
    %c0_7 = arith.constant 0 : index
    %c0_8 = arith.constant 0 : index
    %7 = vector.load %arg4[%c0_6, %c0_7, %c0_8] : memref<2x1x128xf32, #tpu.memory_space<vmem>>, vector<2x1x128xf32>
    %cst = arith.constant dense<0.000000e+00> : vector<2x128xf32>
    %8 = vector.multi_reduction <add>, %6, %cst [1] : vector<2x8x128xf32> to vector<2x128xf32>
    %9 = vector.shape_cast %8 : vector<2x128xf32> to vector<2x1x128xf32>
    %10 = arith.addf %7, %9 : vector<2x1x128xf32>
    %c0_9 = arith.constant 0 : index
    %c0_10 = arith.constant 0 : index
    %c0_11 = arith.constant 0 : index
    %11 = vector.load %arg4[%c0_9, %c0_10, %c0_11] : memref<2x1x128xf32, #tpu.memory_space<vmem>>, vector<2x1x128xf32>
    tpu.vector_store %arg4[%c0_9, %c0_10, %c0_11], %10 {strides = array<i32>} : memref<2x1x128xf32, #tpu.memory_space<vmem>>, vector<2x1x128xf32>,
    return
  }
  func.func @transform_0(%arg0: i32, %arg1: i32) -> (i32, i32, i32) {
    %c0_i32 = arith.constant 0 : i32
    %c0_i32_0 = arith.constant 0 : i32
    return %arg0, %arg1, %c0_i32 : i32, i32, i32
  }
  func.func @transform_1(%arg0: i32, %arg1: i32) -> (i32, i32, i32) {
    %c0_i32 = arith.constant 0 : i32
    %c0_i32_0 = arith.constant 0 : i32
    return %arg0, %arg1, %c0_i32 : i32, i32, i32
  }
  func.func @transform_2(%arg0: i32, %arg1: i32) -> (i32, i32, i32) {
    %c0_i32 = arith.constant 0 : i32
    %c0_i32_0 = arith.constant 0 : i32
    %c0_i32_1 = arith.constant 0 : i32
    return %arg0, %c0_i32, %c0_i32_0 : i32, i32, i32
  }
}

</mosaic_0001>

<llo_original>
// kernel: weighted_mse.1
$region0: #{weighted_mse.1}
  #allocation0 [shape = 'u32[]', space=smem, size = 0x4, offset = 0x4, fixed_abs, tag = 'smem constant byte address 0x4 - core index']
  #allocation1 [shape = 'u32[144,128]{1,0:T(1,128)}', space=vmem, size = 0x12000, scoped, tag = 'internal scratch']
  %s0 = inlined_call_operand.vmem [shape: f32[4,8,128], index: 0, kind: input, shape index: {}]
  %s1 = inlined_call_operand.vmem [shape: f32[4,8,128], index: 1, kind: input, shape index: {}]
  %s2 = inlined_call_operand.vmem [shape: f32[4,1,128], index: 2, kind: output, shape index: {}]
  %s3 = sld [smem:[#allocation0]]
  $region45: #{weighted_mse.1} parent=0
    _
  %s5 = ssub.s32 1, %s3
  %s6 = scalar_select 0, %s5, %s3
  loop: start=0, step=1, limit=4
  $region2: #{weighted_mse.1} parent=0 // loop_pre_header
    _
  $region3: #{weighted_mse.1} parent=0 // loop_header
    %s8 = sphi 0, %s12
    %p9 = scmp.ge.s32.totalorder %s8, 4
    %s15 = sphi 0, %s27
    %s16 = sphi 0, %s23
    %s17 = sphi 0, %s15
    %s18 = sphi 0, %s16
    %s19 = sphi 0, %s17
    %s20 = sphi 0, %s18
    %s32 = sphi 0, %s34
    %s35 = sphi 0, %s32
    %s36 = sphi 0, %s35
    %s52 = sphi 0, %s36
    %s60 = sphi 0, %s62
    %s63 = sphi 0, %s60
    %s64 = sphi 0, %s63
    %s80 = sphi 0, %s64
    %s86 = sphi 0, %s88
    %s89 = sphi 0, %s86
    %s90 = sphi 0, %s89
    %s106 = sphi 0, %s90
  $region4: #{weighted_mse.1} parent=0 // loop_header_branch
    %11 = sbr.rel (%p9) target = $region8
  $region5: #{weighted_mse.1} parent=0 // loop_body
    %s13 = ssub.s32 %s8, 1
    %s14 = ssub.s32 %s8, 2
    %s21 = sadd.s32 1, %s16
    %p22 = scmp.ge.s32.totalorder %s21, 1
    %s23 = scalar_select %p22, 0, %s21
    %s24 = sadd.s32 1, %s15
    %s25 = scalar_select %p22, %s24, %s15
    %p26 = scmp.ge.s32.totalorder %s25, 2
    %s27 = scalar_select %p26, 0, %s25
    %s28 = ssub.s32 %s15, %s27
    %s29 = ssub.s32 %s16, %s23
    %s30 = sor.u32 %s28, %s29
    %p31 = scmp.eq.s32.totalorder %s30, 0
    %s33 = sadd.s32 %s32, 1
    %s34 = scalar_select %p31, %s32, %s33
    %p37 = pneg %p31
    %p38 = scmp.eq.s32.totalorder %s8, 1
    %p39 = por %p37, %p38
    %p40 = scmp.ne.s32.totalorder %s32, %s35
    %p41 = scmp.eq.s32.totalorder %s8, 0
    %p42 = por %p40, %p41
    %p43 = scmp.ne.s32.totalorder %s32, %s35
    %p44 = scmp.eq.s32.totalorder %s13, 1
    %p45 = por %p43, %p44
    %p46 = scmp.ne.s32.totalorder %s35, %s36
    %p47 = scmp.eq.s32.totalorder %s13, 0
    %p48 = por %p46, %p47
    %p49 = scmp.ne.s32.totalorder %s35, %s36
    %p50 = scmp.eq.s32.totalorder %s14, 1
    %p51 = por %p49, %p50
    %p53 = scmp.ne.s32.totalorder %s36, %s52
    %p54 = scmp.eq.s32.totalorder %s14, 0
    %p55 = por %p53, %p54
    %s56 = ssub.s32 %s15, %s27
    %s57 = ssub.s32 %s16, %s23
    %s58 = sor.u32 %s56, %s57
    %p59 = scmp.eq.s32.totalorder %s58, 0
    %s61 = sadd.s32 %s60, 1
    %s62 = scalar_select %p59, %s60, %s61
    %p65 = pneg %p59
    %p66 = scmp.eq.s32.totalorder %s8, 1
    %p67 = por %p65, %p66
    %p68 = scmp.ne.s32.totalorder %s60, %s63
    %p69 = scmp.eq.s32.totalorder %s8, 0
    %p70 = por %p68, %p69
    %p71 = scmp.ne.s32.totalorder %s60, %s63
    %p72 = scmp.eq.s32.totalorder %s13, 1
    %p73 = por %p71, %p72
    %p74 = scmp.ne.s32.totalorder %s63, %s64
    %p75 = scmp.eq.s32.totalorder %s13, 0
    %p76 = por %p74, %p75
    %p77 = scmp.ne.s32.totalorder %s63, %s64
    %p78 = scmp.eq.s32.totalorder %s14, 1
    %p79 = por %p77, %p78
    %p81 = scmp.ne.s32.totalorder %s64, %s80
    %p82 = scmp.eq.s32.totalorder %s14, 0
    %p83 = por %p81, %p82
    %s84 = ssub.s32 %s15, %s27
    %p85 = scmp.eq.s32.totalorder %s84, 0
    %s87 = sadd.s32 %s86, 1
    %s88 = scalar_select %p85, %s86, %s87
    %p91 = pneg %p85
    %p92 = scmp.eq.s32.totalorder %s8, 1
    %p93 = por %p91, %p92
    %p94 = scmp.ne.s32.totalorder %s86, %s89
    %p95 = scmp.eq.s32.totalorder %s8, 0
    %p96 = por %p94, %p95
    %p97 = scmp.ne.s32.totalorder %s86, %s89
    %p98 = scmp.eq.s32.totalorder %s13, 1
    %p99 = por %p97, %p98
    %p100 = scmp.ne.s32.totalorder %s89, %s90
    %p101 = scmp.eq.s32.totalorder %s13, 0
    %p102 = por %p100, %p101
    %p103 = scmp.ne.s32.totalorder %s89, %s90
    %p104 = scmp.eq.s32.totalorder %s14, 1
    %p105 = por %p103, %p104
    %p107 = scmp.ne.s32.totalorder %s90, %s106
    %p108 = scmp.eq.s32.totalorder %s14, 0
    %p109 = por %p107, %p108
    %p110 = scmp.le.s32.totalorder 1, %s8
    %p111 = scmp.lt.s32.totalorder %s8, 3
    %p112 = pnand %p110, %p111
    %p113 = pneg %p112
    // Predicated region
    $region9: #{weighted_mse.1} parent=5 // pred_check
      _
    $region10: #{weighted_mse.1} parent=5 // pred_check_branch
      %115 = sbr.rel (%p112) target = $region12
    $region11: #{weighted_mse.1} parent=5 // pred_region
      %s116 = ssub.s32 %s8, 1
    $region12: #{weighted_mse.1} parent=5 // pred_fallthru
      _
    %p117 = scmp.lt.s32.totalorder %s8, 2
    // Predicated region
    $region13: #{weighted_mse.1} parent=5 // pred_check
      %p118 = pneg %p117
    $region14: #{weighted_mse.1} parent=5 // pred_check_branch
      %120 = sbr.rel (%p118) target = $region16
    $region15: #{weighted_mse.1} parent=5 // pred_region
      // Predicated region
      $region17: #{weighted_mse.1} parent=15 // pred_check
        %p121 = pneg %p42
      $region18: #{weighted_mse.1} parent=15 // pred_check_branch
        %123 = sbr.rel (%p121) target = $region20
      $region19: #{weighted_mse.1} parent=15 // pred_region
        %s124 = smul.u32 2, %s15
        %p125 = scmp.lt.s32.totalorder %s124, 3
        %s126 = scalar_select %p125, %s124, 3
        %p127 = scmp.lt.s32.totalorder %s16, 0
        %s128 = scalar_select %p127, %s16, 0
        %s129 = sadd.s32 %s128, %s126
        %s130 = smul.addr %s129, 8
        %s131 = scalar_lea.vmem %s0, %s130
        %s132 = smul.u32 2, %s15
      $region20: #{weighted_mse.1} parent=15 // pred_fallthru
        _
      // Predicated region
      $region21: #{weighted_mse.1} parent=15 // pred_check
        %p133 = pneg %p70
      $region22: #{weighted_mse.1} parent=15 // pred_check_branch
        %135 = sbr.rel (%p133) target = $region24
      $region23: #{weighted_mse.1} parent=15 // pred_region
        %s136 = smul.u32 2, %s15
        %p137 = scmp.lt.s32.totalorder %s136, 3
        %s138 = scalar_select %p137, %s136, 3
        %p139 = scmp.lt.s32.totalorder %s16, 0
        %s140 = scalar_select %p139, %s16, 0
        %s141 = sadd.s32 %s140, %s138
        %s142 = smul.addr %s141, 8
        %s143 = scalar_lea.vmem %s1, %s142
        %s144 = smul.u32 2, %s15
      $region24: #{weighted_mse.1} parent=15 // pred_fallthru
        _
    $region16: #{weighted_mse.1} parent=5 // pred_fallthru
      _
    %p145 = scmp.le.s32.totalorder 1, %s8
    %p146 = scmp.lt.s32.totalorder %s8, 3
    %p147 = pnand %p145, %p146
    %p148 = pneg %p147
    // Predicated region
    $region25: #{weighted_mse.1} parent=5 // pred_check
      _
    $region26: #{weighted_mse.1} parent=5 // pred_check_branch
      %150 = sbr.rel (%p147) target = $region28
    $region27: #{weighted_mse.1} parent=5 // pred_region
      %s151 = ssub.s32 %s8, 1
      %s152 = smul.u32 2, %s17
      %p153 = scmp.lt.s32.totalorder %s152, 3
      %s154 = scalar_select %p153, %s152, 3
      %p155 = scmp.lt.s32.totalorder %s18, 0
      %s156 = scalar_select %p155, %s18, 0
      %s157 = sadd.s32 %s156, %s154
      %s158 = smul.addr %s157, 8
      %s159 = scalar_lea.vmem %s0, %s158
      %p160 = pneg %p48
      %p161 = pneg %p45
      %s162 = smul.u32 2, %s17
      %p163 = scmp.lt.s32.totalorder %s162, 3
      %s164 = scalar_select %p163, %s162, 3
      %p165 = scmp.lt.s32.totalorder %s18, 0
      %s166 = scalar_select %p165, %s18, 0
      %s167 = sadd.s32 %s166, %s164
      %s168 = smul.addr %s167, 8
      %s169 = scalar_lea.vmem %s1, %s168
      %p170 = pneg %p76
      %p171 = pneg %p73
      %p172 = pneg %p102
      %p173 = pneg %p99
      %s174 = smul.u32 2, %s17
      %p175 = scmp.lt.s32.totalorder %s174, 3
      %s176 = scalar_select %p175, %s174, 3
      %s177 = scalar_lea.vmem %s2, %s176
      %s178 = smul.u32 2, %s17
      %p179 = scmp.lt.s32.totalorder %s178, 3
      %s180 = scalar_select %p179, %s178, 3
      %p181 = scmp.lt.s32.totalorder %s18, 0
      %s182 = scalar_select %p181, %s18, 0
      %s183 = sadd.s32 %s182, %s180
      %s184 = smul.addr %s183, 8
      %s185 = scalar_lea.vmem %s0, %s184
      %s186 = smul.u32 2, %s17
      %s187 = smul.u32 2, %s17
      %p188 = scmp.lt.s32.totalorder %s187, 3
      %s189 = scalar_select %p188, %s187, 3
      %p190 = scmp.lt.s32.totalorder %s18, 0
      %s191 = scalar_select %p190, %s18, 0
      %s192 = sadd.s32 %s191, %s189
      %s193 = smul.addr %s192, 8
      %s194 = scalar_lea.vmem %s1, %s193
      %s195 = smul.u32 2, %s17
      %s196 = smul.u32 2, %s17
      %p197 = scmp.lt.s32.totalorder %s196, 3
      %s198 = scalar_select %p197, %s196, 3
      %s199 = scalar_lea.vmem %s2, %s198
      %s200 = smul.u32 2, %s17
      %p201 = scmp.eq.s32.totalorder %s18, 0
      // Predicated region
      $region29: #{weighted_mse.1} parent=27 // pred_check
        %p202 = pneg %p201
      $region30: #{weighted_mse.1} parent=27 // pred_check_branch
        %204 = sbr.rel (%p202) target = $region32
      $region31: #{weighted_mse.1} parent=27 // pred_region
        %205 = vst [vmem:[%s199] sm:$0x1] 0.0
        %206 = vst [vmem:[%s199 + $0x1] sm:$0x1] 0.0
      $region32: #{weighted_mse.1} parent=27 // pred_fallthru
        _
      %v207 = vld [vmem:[%s185] sm:$0xff]
      %v208 = vld [vmem:[%s185 + $0x8] sm:$0xff]
      %v209 = vld [vmem:[%s194] sm:$0xff]
      %v210 = vld [vmem:[%s194 + $0x8] sm:$0xff]
      %v211 = vsub.f32 %v207, %v209
      %v212 = vsub.f32 %v208, %v210
      %v213 = vmul.f32 %v211, %v211
      %v214 = vmul.f32 %v212, %v212
      %v215 = vld [vmem:[%s199] sm:$0x1]
      %v216 = vld [vmem:[%s199 + $0x1] sm:$0x1]
      %v217 = vrot.slane %v213, 4
      %v218 = vadd.f32 %v213, %v217
      %v219 = vrot.slane %v218, 2
      %v220 = vadd.f32 %v218, %v219
      %v221 = vrot.slane %v220, 1
      %v222 = vadd.f32 %v220, %v221
      %v223 = vrot.slane %v214, 4
      %v224 = vadd.f32 %v214, %v223
      %v225 = vrot.slane %v224, 2
      %v226 = vadd.f32 %v224, %v225
      %v227 = vrot.slane %v226, 1
      %v228 = vadd.f32 %v226, %v227
      %v229 = vadd.f32 %v215, %v222
      %v230 = vadd.f32 %v216, %v228
      %231 = vst [vmem:[%s199] sm:$0x1] %v229
      %232 = vst [vmem:[%s199 + $0x1] sm:$0x1] %v230
      %s233 = smul.u32 2, %s17
      %p234 = scmp.lt.s32.totalorder %s233, 3
      %s235 = scalar_select %p234, %s233, 3
      %s236 = scalar_lea.vmem %s2, %s235
      // Predicated region
      $region33: #{weighted_mse.1} parent=27 // pred_check
        %p237 = pneg %p99
      $region34: #{weighted_mse.1} parent=27 // pred_check_branch
        %239 = sbr.rel (%p237) target = $region36
      $region35: #{weighted_mse.1} parent=27 // pred_region
        %s240 = smul.u32 2, %s17
      $region36: #{weighted_mse.1} parent=27 // pred_fallthru
        _
    $region28: #{weighted_mse.1} parent=5 // pred_fallthru
      _
    %p241 = scmp.le.s32.totalorder 2, %s8
    // Predicated region
    $region37: #{weighted_mse.1} parent=5 // pred_check
      %p242 = pneg %p241
    $region38: #{weighted_mse.1} parent=5 // pred_check_branch
      %244 = sbr.rel (%p242) target = $region40
    $region39: #{weighted_mse.1} parent=5 // pred_region
      %s245 = ssub.s32 %s8, 2
      // Predicated region
      $region41: #{weighted_mse.1} parent=39 // pred_check
        %p246 = pneg %p105
      $region42: #{weighted_mse.1} parent=39 // pred_check_branch
        %248 = sbr.rel (%p246) target = $region44
      $region43: #{weighted_mse.1} parent=39 // pred_region
        %s249 = smul.u32 2, %s19
        %p250 = scmp.lt.s32.totalorder %s249, 3
        %s251 = scalar_select %p250, %s249, 3
        %s252 = scalar_lea.vmem %s2, %s251
      $region44: #{weighted_mse.1} parent=39 // pred_fallthru
        _
    $region40: #{weighted_mse.1} parent=5 // pred_fallthru
      _
  $region6: #{weighted_mse.1} parent=0 // loop_footer
    %s12 = sadd.s32 1, %s8
  $region7: #{weighted_mse.1} parent=0 // loop_footer_branch
    %7 = sbr.rel target = $region3
  $region8: #{weighted_mse.1} parent=0 // loop_exit
    _

</llo_original>
